<compile_context>
chip_gen: v7x
topology: tpu7x:2x2x1
jax: 0.10.0
libtpu: 0.0.40
codegen_flags: <defaults>
</compile_context>

<pallas_src>
import functools

import numpy as np

import jax
import jax.numpy as jnp
from jax.experimental import pallas as pl
from jax.experimental.pallas import tpu as pltpu


def _round_up(x: int, m: int) -> int:
    return (x + m - 1) // m * m


def _linear_softmax_kernel(x_ref, w_ref, b_ref, o_ref, *, c_real, compute_dtype):
    # In-kernel cast (f32 -> bf16 by default); accumulation stays f32 on the MXU.
    x = x_ref[...].astype(compute_dtype)                    # (TB, D)
    logits = jnp.dot(x, w_ref[...], preferred_element_type=jnp.float32)
    logits = logits + b_ref[...]                            # (TB, C_pad); pad cols ~ -1e30
    m = jnp.max(logits, axis=-1, keepdims=True)             # stable softmax
    e = jnp.exp(logits - m)                                 # padded cols underflow to 0
    denom = jnp.sum(e, axis=-1, keepdims=True)
    probs = e / denom                                       # exact: rows sum to 1
    # Store only the real classes -> unpadded (TB, C) HBM write (masked vst is
    # cheaper than 8x the bytes for small C).
    o_ref[...] = probs[:, :c_real].astype(o_ref.dtype)


@functools.partial(jax.jit,
                   static_argnames=("block_b", "compute_dtype", "out_dtype"))
def linear_classifier_aum(x, w, b, *, block_b: int = 512,
                          compute_dtype=jnp.bfloat16,
                          out_dtype=jnp.float32):
    """Forward pass of LinearClassifier_AUM.

    x: (B, D) float32
    w: (D, C) float32   (transposed vs. PyTorch's (C, D) nn.Linear weight)
    b: (C,)   float32
    returns probs: (B, C) out_dtype, rows sum to 1.
    """
    B, D = x.shape
    C = w.shape[1]

    # Lane-dense class dim for the MXU / softmax reductions (internal only).
    # Padded classes: zero weights + huge negative bias => probability exactly 0.
    C_pad = _round_up(C, 128)
    w_p = jnp.pad(w, ((0, 0), (0, C_pad - C))).astype(compute_dtype)  # tiny array
    b_p = jnp.pad(b, (0, C_pad - C), constant_values=-1e30).reshape(1, C_pad)
    b_p = b_p.astype(jnp.float32)

    w_itemsize = np.dtype(compute_dtype).itemsize
    out_itemsize = np.dtype(out_dtype).itemsize

    # Batch tile: multiple of 8 (sublane), aim for >= 4 grid steps so v7x's two
    # TensorCores both get work, capped at block_b.
    TB = _round_up(max(pl.cdiv(B, 4), 1), 8)
    TB = min(TB, block_b, _round_up(B, 8))
    TB = max(TB, 8)

    # Keep double-buffered x/out tiles + resident W/b inside a conservative
    # budget (v7x has only 64 MiB VMEM per TensorCore).
    def _tile_vmem_bytes(tb):
        x_bytes = 2 * tb * D * 4                       # f32 x tile, double-buffered
        o_bytes = 2 * tb * C * out_itemsize            # output tile, double-buffered
        wb_bytes = 2 * (D * C_pad * w_itemsize + C_pad * 4)  # resident W + bias
        return x_bytes + o_bytes + wb_bytes

    VMEM_BUDGET = 40 * 1024 * 1024
    while TB > 8 and _tile_vmem_bytes(TB) > VMEM_BUDGET:
        TB = max(8, _round_up(TB // 2, 8))

    grid = (pl.cdiv(B, TB),)   # no batch padding; last block is clipped

    kernel = functools.partial(_linear_softmax_kernel,
                               c_real=C, compute_dtype=compute_dtype)

    cost = pl.CostEstimate(
        flops=2 * B * D * C_pad,
        transcendentals=B * C_pad,
        bytes_accessed=(B * D * 4                      # x (f32, read once)
                        + D * C_pad * w_itemsize       # W
                        + C_pad * 4                    # bias
                        + B * C * out_itemsize),       # probs
    )

    out = pl.pallas_call(
        kernel,
        out_shape=jax.ShapeDtypeStruct((B, C), out_dtype),
        grid=grid,
        in_specs=[
            pl.BlockSpec((TB, D), lambda i: (i, 0)),       # streamed x tile (f32)
            pl.BlockSpec((D, C_pad), lambda i: (0, 0)),    # resident W
            pl.BlockSpec((1, C_pad), lambda i: (0, 0)),    # resident bias
        ],
        out_specs=pl.BlockSpec((TB, C), lambda i: (i, 0)), # unpadded output
        compiler_params=pltpu.CompilerParams(
            dimension_semantics=("parallel",),
            vmem_limit_bytes=48 * 1024 * 1024,
        ),
        cost_estimate=cost,
    )(x, w_p, b_p)

    return out


if __name__ == "__main__":
    key = jax.random.PRNGKey(0)
    k_x, k_w, k_b = jax.random.split(key, 3)

    B, D, C = 8, 32, 16  # batch, input_dim, num_classes

    x = jax.random.normal(k_x, (B, D), dtype=jnp.float32)
    # Deterministic "nn.Linear"-style params (synthetic; not a checkpoint).
    bound = 1.0 / (D ** 0.5)
    w = jax.random.uniform(k_w, (D, C), minval=-bound, maxval=bound,
                           dtype=jnp.float32)
    b = jax.random.uniform(k_b, (C,), minval=-bound, maxval=bound,
                           dtype=jnp.float32)

    ref = jax.nn.softmax(x @ w + b, axis=1)

    # 1) f32 compute path.
    probs_f32 = jax.block_until_ready(
        linear_classifier_aum(x, w, b, compute_dtype=jnp.float32))
    assert probs_f32.shape == (B, C)
    assert jnp.allclose(probs_f32, ref, atol=2e-3, rtol=2e-3)
    # Exact normalization -> row sums are 1 up to f32 rounding.
    assert jnp.allclose(jnp.sum(probs_f32, axis=1), 1.0, atol=1e-4)

    # 2) Default bf16-MXU path: bf16-appropriate element tolerance; row sums
    #    still exact because normalization happens after the matmul.
    probs = jax.block_until_ready(linear_classifier_aum(x, w, b))
    assert probs.shape == (B, C)
    assert jnp.allclose(probs, ref, atol=2e-2, rtol=2e-2)
    assert jnp.allclose(jnp.sum(probs, axis=1), 1.0, atol=1e-3)

    # 3) Ragged batch: exercises the non-divisible (clipped) last grid block.
    B2 = 300
    x2 = jax.random.normal(jax.random.PRNGKey(1), (B2, D), dtype=jnp.float32)
    ref2 = jax.nn.softmax(x2 @ w + b, axis=1)
    probs2 = jax.block_until_ready(
        linear_classifier_aum(x2, w, b, compute_dtype=jnp.float32))
    assert probs2.shape == (B2, C)
    assert jnp.allclose(probs2, ref2, atol=2e-3, rtol=2e-3)
    assert jnp.allclose(jnp.sum(probs2, axis=1), 1.0, atol=1e-4)

    print("KERNEL_OK")
</pallas_src>

<mosaic_0001>
module attributes {stable_mosaic.version = 11 : i64} {
  func.func @_linear_softmax_kernel(%arg0: i32, %arg1: memref<8x32xf32, #tpu.memory_space<vmem>>, %arg2: memref<32x128xf32, #tpu.memory_space<vmem>>, %arg3: memref<1x128xf32, #tpu.memory_space<vmem>>, %arg4: memref<8x16xf32, #tpu.memory_space<vmem>>) attributes {dimension_semantics = [#tpu.dimension_semantics<parallel>], iteration_bounds = array<i64: 1>, scalar_prefetch = 0 : i64, scratch_operands = 0 : i64, tpu.core_type = #tpu.core_type<tc>, window_params = [{transform_indices = @transform_0, window_bounds = array<i64: 8, 32>}, {pipeline_mode = #tpu.pipeline_mode<synchronous>, transform_indices = @transform_1, window_bounds = array<i64: 32, 128>}, {pipeline_mode = #tpu.pipeline_mode<synchronous>, transform_indices = @transform_2, window_bounds = array<i64: 1, 128>}, {transform_indices = @transform_3, window_bounds = array<i64: 8, 16>}]} {
    %c0 = arith.constant 0 : index
    %c0_0 = arith.constant 0 : index
    %0 = vector.load %arg1[%c0, %c0_0] : memref<8x32xf32, #tpu.memory_space<vmem>>, vector<8x32xf32>
    %c0_1 = arith.constant 0 : index
    %c0_2 = arith.constant 0 : index
    %1 = vector.load %arg2[%c0_1, %c0_2] : memref<32x128xf32, #tpu.memory_space<vmem>>, vector<32x128xf32>
    %cst = arith.constant dense<0.000000e+00> : vector<8x128xf32>
    %2 = tpu.matmul %0, %1, %cst {dimension_numbers = #tpu.dot_dimension_numbers<[1], [0], [0], [1], [0, 0, 1, 1], [], []>} : vector<8x32xf32>, vector<32x128xf32>, vector<8x128xf32> -> vector<8x128xf32>
    %c0_3 = arith.constant 0 : index
    %c0_4 = arith.constant 0 : index
    %3 = vector.load %arg3[%c0_3, %c0_4] : memref<1x128xf32, #tpu.memory_space<vmem>>, vector<1x128xf32>
    %4 = vector.broadcast %3 : vector<1x128xf32> to vector<8x128xf32>
    %5 = arith.addf %2, %4 : vector<8x128xf32>
    %cst_5 = arith.constant dense<0xFF800000> : vector<8xf32>
    %6 = vector.multi_reduction <maximumf>, %5, %cst_5 [1] : vector<8x128xf32> to vector<8xf32>
    %7 = vector.shape_cast %6 : vector<8xf32> to vector<8x1xf32>
    %8 = vector.broadcast %7 : vector<8x1xf32> to vector<8x128xf32>
    %9 = arith.subf %5, %8 : vector<8x128xf32>
    %10 = math.exp %9 : vector<8x128xf32>
    %cst_6 = arith.constant dense<0.000000e+00> : vector<8xf32>
    %11 = vector.multi_reduction <add>, %10, %cst_6 [1] : vector<8x128xf32> to vector<8xf32>
    %12 = vector.shape_cast %11 : vector<8xf32> to vector<8x1xf32>
    %13 = vector.broadcast %12 : vector<8x1xf32> to vector<8x128xf32>
    %14 = arith.divf %10, %13 : vector<8x128xf32>
    %15 = vector.extract_strided_slice %14 {offsets = [0, 0], sizes = [8, 16], strides = [1, 1]} : vector<8x128xf32> to vector<8x16xf32>
    %c0_7 = arith.constant 0 : index
    %c0_8 = arith.constant 0 : index
    %16 = vector.load %arg4[%c0_7, %c0_8] : memref<8x16xf32, #tpu.memory_space<vmem>>, vector<8x16xf32>
    tpu.vector_store %arg4[%c0_7, %c0_8], %15 {strides = array<i32>} : memref<8x16xf32, #tpu.memory_space<vmem>>, vector<8x16xf32>,
    return
  }
  func.func @transform_0(%arg0: i32) -> (i32, i32) {
    %c0_i32 = arith.constant 0 : i32
    %c0_i32_0 = arith.constant 0 : i32
    return %arg0, %c0_i32 : i32, i32
  }
  func.func @transform_1(%arg0: i32) -> (i32, i32) {
    %c0_i32 = arith.constant 0 : i32
    %c0_i32_0 = arith.constant 0 : i32
    %c0_i32_1 = arith.constant 0 : i32
    return %c0_i32, %c0_i32_0 : i32, i32
  }
  func.func @transform_2(%arg0: i32) -> (i32, i32) {
    %c0_i32 = arith.constant 0 : i32
    %c0_i32_0 = arith.constant 0 : i32
    %c0_i32_1 = arith.constant 0 : i32
    return %c0_i32, %c0_i32_0 : i32, i32
  }
  func.func @transform_3(%arg0: i32) -> (i32, i32) {
    %c0_i32 = arith.constant 0 : i32
    %c0_i32_0 = arith.constant 0 : i32
    return %arg0, %c0_i32 : i32, i32
  }
}

</mosaic_0001>

<llo_original>
// kernel: linear_classifier_aum.1
$region0: #{linear_classifier_aum.1}
  #allocation0 [shape = 'u32[]', space=smem, size = 0x4, offset = 0x4, fixed_abs, tag = 'smem constant byte address 0x4 - core index']
  #allocation1 [shape = 'u32[144,128]{1,0:T(1,128)}', space=vmem, size = 0x12000, scoped, tag = 'internal scratch']
  %s0 = inlined_call_operand.vmem [shape: f32[8,32], index: 0, kind: input, shape index: {}]
  %s1 = inlined_call_operand.vmem [shape: f32[32,128], index: 1, kind: input, shape index: {}]
  %s2 = inlined_call_operand.vmem [shape: f32[1,128], index: 2, kind: input, shape index: {}]
  %s3 = inlined_call_operand.hbm [shape: f32[8,16], index: 3, kind: output, shape index: {}]
  %s4 = sld [smem:[#allocation0]]
  $region22: #{linear_classifier_aum.1} parent=0
    _
  %s6 = ssub.s32 1, %s4
  %s7 = scalar_select 0, %s6, %s4
  $region1: #{linear_classifier_aum.1} parent=0
    #allocation2 [shape = 'u8[4096]{0}', space=vmem, size = 0x1000, scoped, tag = 'output window, operand 0, single buffered']
    #allocation3 [shape = 's32[1]{0}', space=sflag, size = 0x4, scoped, tag = 'scoped memory for linear_classifier_aum.1']
    %8 = vsyncpa [#allocation3], 0
    // Predicated region
    $region2: #{linear_classifier_aum.1} parent=1 // pred_check
      _
    $region3: #{linear_classifier_aum.1} parent=1 // pred_check_branch
      %10 = sbr.rel (0) target = $region5
    $region4: #{linear_classifier_aum.1} parent=1 // pred_region
      _
    $region5: #{linear_classifier_aum.1} parent=1 // pred_fallthru
      _
    // Predicated region
    $region6: #{linear_classifier_aum.1} parent=1 // pred_check
      _
    $region7: #{linear_classifier_aum.1} parent=1 // pred_check_branch
      %12 = sbr.rel (0) target = $region9
    $region8: #{linear_classifier_aum.1} parent=1 // pred_region
      _
    $region9: #{linear_classifier_aum.1} parent=1 // pred_fallthru
      _
    // Predicated region
    $region10: #{linear_classifier_aum.1} parent=1 // pred_check
      _
    $region11: #{linear_classifier_aum.1} parent=1 // pred_check_branch
      %14 = sbr.rel (0) target = $region13
    $region12: #{linear_classifier_aum.1} parent=1 // pred_region
      _
    $region13: #{linear_classifier_aum.1} parent=1 // pred_fallthru
      _
    %v15 = vld [vmem:[%s0] sm:$0xff]
    %v16 = vld [vmem:[%s1] sm:$0xff]
    %v17 = vld [vmem:[%s1 + $0x8] sm:$0xff]
    %v18 = vld [vmem:[%s1 + $0x10] sm:$0xff]
    %v19 = vld [vmem:[%s1 + $0x18] sm:$0xff]
    %v20 = vld [vmem:[%s2] sm:$0x1]
    %v22 = vlaneseq
    %v23 = vshrl.u32 %v22, 7
    %v24 = vsub.s32 0, %v23
    %v25 = vrot.slane %v20, %v24
    %vm27 = vcmask 261120
    %v29 = vsel %vm27, %v15, 0
    %31 = vmatprep.subr.mxu0 0.0
    %32 = vmatpush1.msra.mxu0 %v16
    %33 = vmatprep.subr.mxu0 0.0
    %34 = vmatpush1.msra.mxu0 %v17
    %35 = vmatprep.subr.mxu0 0.0
    %36 = vmatpush1.msra.mxu0 %v18
    %37 = vmatprep.subr.mxu0 0.0
    %38 = vmatpush1.msra.mxu0 %v19
    %39 = vmatprep.subr.mxu0 0.0
    %40 = vmatpush1.msra.mxu0 0.0
    %41 = vmatprep.subr.mxu0 0.0
    %42 = vmatpush1.msra.mxu0 0.0
    %43 = vmatprep.subr.mxu0 0.0
    %44 = vmatpush1.msra.mxu0 0.0
    %45 = vmatprep.subr.mxu0 0.0
    %46 = vmatpush1.msra.mxu0 0.0
    %47 = vmatprep.subr.mxu0 0.0
    %48 = vmatpush1.msra.mxu0 0.0
    %49 = vmatprep.subr.mxu0 0.0
    %50 = vmatpush1.msra.mxu0 0.0
    %51 = vmatprep.subr.mxu0 0.0
    %52 = vmatpush1.msra.mxu0 0.0
    %53 = vmatprep.subr.mxu0 0.0
    %54 = vmatpush1.msra.mxu0 0.0
    %55 = vmatprep.subr.mxu0 0.0
    %56 = vmatpush1.msra.mxu0 0.0
    %57 = vmatprep.subr.mxu0 0.0
    %58 = vmatpush1.msra.mxu0 0.0
    %59 = vmatprep.subr.mxu0 0.0
    %60 = vmatpush1.msra.mxu0 0.0
    %61 = vmatprep.subr.mxu0 0.0
    %62 = vmatpush1.msra.mxu0 0.0
    %63 = vmatprep.subr.mxu0 0.0
    %64 = vmatpush1.msra.mxu0 0.0
    %65 = vmatprep.subr.mxu0 0.0
    %66 = vmatpush1.msra.mxu0 0.0
    %67 = vmatprep.subr.mxu0 0.0
    %68 = vmatpush1.msra.mxu0 0.0
    %69 = vmatprep.subr.mxu0 0.0
    %70 = vmatpush1.msra.mxu0 0.0
    %71 = vmatprep.subr.mxu0 0.0
    %72 = vmatpush1.msra.mxu0 0.0
    %73 = vmatprep.subr.mxu0 0.0
    %74 = vmatpush1.msra.mxu0 0.0
    %75 = vmatprep.subr.mxu0 0.0
    %76 = vmatpush1.msra.mxu0 0.0
    %77 = vmatprep.subr.mxu0 0.0
    %78 = vmatpush1.msra.mxu0 0.0
    %79 = vmatprep.subr.mxu0 0.0
    %80 = vmatpush1.msra.mxu0 0.0
    %81 = vmatprep.subr.mxu0 0.0
    %82 = vmatpush1.msra.mxu0 0.0
    %83 = vmatprep.subr.mxu0 0.0
    %84 = vmatpush1.msra.mxu0 0.0
    %85 = vmatprep.subr.mxu0 0.0
    %86 = vmatpush1.msra.mxu0 0.0
    %87 = vmatprep.subr.mxu0 0.0
    %88 = vmatpush1.msra.mxu0 0.0
    %89 = vmatprep.subr.mxu0 0.0
    %90 = vmatpush1.msra.mxu0 0.0
    %91 = vmatprep.subr.mxu0 0.0
    %92 = vmatpush1.msra.mxu0 0.0
    %93 = vmatprep.subr.mxu0 0.0
    %94 = vmatpush1.msra.mxu0 0.0
    %95 = vmatprep.mubr.f32.mxu0 0.0
    %96 = vmatmul.mubr.f32.gmra.mrb[0].mxu0 %v29
    %v97 = vpop.f32.mrb[0].mxu0
    %v98 = vadd.f32 %v25, %v97
    %v99 = vpop.f32.mrb[0].mxu0
    %100 = vdwg.mxu0
    %101 = vmax.xlane.f32.xlu0 %v98
    %v102 = vpop.xlane.xlu0 %101
    %v103 = vsub.f32 %v98, %v102
    %v104 = vmul.f32 %v103, 1.442695
    %v105 = vpow.pop %v104
    %106 = vadd.xlane.f32.xlu0 %v105
    %v107 = vpop.xlane.xlu0 %106
    %v108 = vrcp.pop %v107
    %v109 = vmul.f32 %v105, %v108
    %vm110 = vcmask 130048
    %111 = vst.msk [vmem:[#allocation2] sm:$0xff] %vm110, %v109
    // Predicated region
    $region14: #{linear_classifier_aum.1} parent=1 // pred_check
      _
    $region15: #{linear_classifier_aum.1} parent=1 // pred_check_branch
      %113 = sbr.rel (0) target = $region17
    $region16: #{linear_classifier_aum.1} parent=1 // pred_region
      %s115 = ssub.s32 128, 128
      %116 = vsyncadd [#allocation3], %s115
      %s118 = sshll.u32 [#allocation2], 4
      %s119 = int_to_ptr.vmem [resolvable:$true] %s118
      %121 = dma.vmem_to_hbm [thread:$0]  %s119, 128, %s3, [#allocation3]
    $region17: #{linear_classifier_aum.1} parent=1 // pred_fallthru
      _
    // Predicated region
    $region18: #{linear_classifier_aum.1} parent=1 // pred_check
      _
    $region19: #{linear_classifier_aum.1} parent=1 // pred_check_branch
      %123 = sbr.rel (0) target = $region21
    $region20: #{linear_classifier_aum.1} parent=1 // pred_region
      %124 = dma.done [#allocation3], 128
    $region21: #{linear_classifier_aum.1} parent=1 // pred_fallthru
      _
    %125 = vsyncpa [#allocation3], 1

</llo_original>
